<compile_context>
chip_gen: v7x
topology: tpu7x:2x2x1
jax: 0.10.0
libtpu: 0.0.40
codegen_flags: <defaults>
</compile_context>

<pallas_src>
import functools
import math

import jax
import jax.numpy as jnp
from jax.experimental import pallas as pl
from jax.experimental.pallas import tpu as pltpu

_INV_SQRT2 = 1.0 / math.sqrt(2.0)


def _round_up(x: int, m: int) -> int:
    return ((x + m - 1) // m) * m


def _cdiv(a: int, b: int) -> int:
    return (a + b - 1) // b


def _vmem_capacity_bytes() -> int:
    """Physical VMEM per TensorCore; conservative fallback if unqueryable."""
    try:
        return int(pltpu.get_tpu_info().vmem_capacity_bytes)
    except Exception:
        return 64 * 1024 * 1024  # v7x-sized fallback is safe on all generations


# --------------------------------------------------------------------------- #
# Kernel body: one (row tile i, n_state tile j) step.
# --------------------------------------------------------------------------- #
def _mlp_kernel(x_ref, wfcg_ref, bfc_ref, wproj_ref, bproj_ref, o_ref, acc_ref,
                *, approx_gelu: bool):
    j = pl.program_id(1)
    tn = bfc_ref.shape[-1]

    @pl.when(j == 0)
    def _init():
        acc_ref[...] = jnp.zeros_like(acc_ref)

    # One MXU pass over x for this n_state tile: columns are [c_fc_j | gate_j].
    y = jnp.dot(x_ref[...], wfcg_ref[...], preferred_element_type=jnp.float32)
    h = y[:, :tn] + bfc_ref[...]          # c_fc pre-activation (f32)
    g = y[:, tn:]                         # gate (Linear, no bias)

    if approx_gelu:
        # tanh approximation runs on the EUP (free VLIW slot alongside MXU/VALU).
        h = jax.nn.gelu(h, approximate=True)
    else:
        # Exact erf GELU matches nn.GELU()'s default.
        h = 0.5 * h * (1.0 + jax.lax.erf(h * _INV_SQRT2))

    # Gate multiply, cast only at the second MXU input; accumulate c_proj in f32.
    h = (h * g).astype(wproj_ref.dtype)
    acc_ref[...] += jnp.dot(h, wproj_ref[...], preferred_element_type=jnp.float32)

    @pl.when(j == pl.num_programs(1) - 1)
    def _finalize():
        # dropout(resid_pdrop) is identity at inference.
        o_ref[...] = (acc_ref[...] + bproj_ref[...]).astype(o_ref.dtype)


# --------------------------------------------------------------------------- #
# Host-side weight preparation (call ONCE per layer and cache the result).
# --------------------------------------------------------------------------- #
def prepare_mlp_weights(w_fc, b_fc, w_gate, w_proj, b_proj,
                        *, compute_dtype=jnp.bfloat16, tn_max=512):
    nx, n_state = w_fc.shape
    nx_p = _round_up(nx, 128)
    ns_p = _round_up(n_state, 128)

    # n_state reduction tile: largest multiple-of-128 divisor of ns_p <= tn_max.
    q = ns_p // 128
    tn = 128
    for d in range(min(tn_max // 128, q), 0, -1):
        if q % d == 0:
            tn = 128 * d
            break
    nk = ns_p // tn

    def pad2(a, r, c):
        return jnp.pad(a, ((0, r - a.shape[0]), (0, c - a.shape[1])))

    # Block-interleave fc / gate columns per n_state tile so one (nx_p, 2*tn)
    # column block of the fused weight carries both halves of tile j.
    w_fc_b = pad2(w_fc, nx_p, ns_p).reshape(nx_p, nk, tn)
    w_gate_b = pad2(w_gate, nx_p, ns_p).reshape(nx_p, nk, tn)
    w_fcg = jnp.concatenate([w_fc_b, w_gate_b], axis=2).reshape(nx_p, 2 * ns_p)
    w_fcg = w_fcg.astype(compute_dtype)

    w_proj_p = pad2(w_proj, ns_p, nx_p).astype(compute_dtype)
    b_fc_p = jnp.pad(b_fc, (0, ns_p - n_state)).reshape(1, ns_p).astype(jnp.float32)
    b_proj_p = jnp.pad(b_proj, (0, nx_p - nx)).reshape(1, nx_p).astype(jnp.float32)

    return dict(w_fcg=w_fcg, b_fc=b_fc_p, w_proj=w_proj_p, b_proj=b_proj_p,
                nx=nx, n_state=n_state, nx_p=nx_p, ns_p=ns_p, tn=tn, nk=nk,
                compute_dtype=compute_dtype)


# --------------------------------------------------------------------------- #
# Forward pass with pre-prepared weights.
# --------------------------------------------------------------------------- #
def mlp_forward(x, weights, *, tm_max=None, approx_gelu=False):
    B, T, nx = x.shape
    assert nx == weights["nx"], "n_embd mismatch with prepared weights"
    nx_p, ns_p = weights["nx_p"], weights["ns_p"]
    tn, nk = weights["tn"], weights["nk"]
    compute_dtype = weights["compute_dtype"]
    M = B * T

    vmem_cap = _vmem_capacity_bytes()
    if tm_max is None:
        # 128 MiB chips (v5e/v6e) can afford a bigger row tile than v7x (64 MiB).
        tm_max = 512 if vmem_cap >= 100 * 1024 * 1024 else 256

    # Row tile: bound padding waste (tm ~= M / n_tiles) and guarantee >= 2
    # parallel grid steps whenever possible (v7x has 2 TensorCores).
    n_row_tiles = max(1, _cdiv(M, tm_max))
    if n_row_tiles < 2 and M > 8:
        n_row_tiles = 2
    tm = _round_up(_cdiv(M, n_row_tiles), 8)
    m_p = n_row_tiles * tm

    x2d = jnp.pad(x.reshape(M, nx), ((0, m_p - M), (0, nx_p - nx)))
    x2d = x2d.astype(compute_dtype)

    out_bytes = jnp.dtype(x.dtype).itemsize

    # Advisory cost estimate (padded sizes; each array counted once).
    flops = 2 * m_p * nx_p * (2 * ns_p) + 2 * m_p * ns_p * nx_p
    bytes_accessed = (m_p * nx_p * 2
                      + weights["w_fcg"].size * 2 + weights["w_proj"].size * 2
                      + (ns_p + nx_p) * 4
                      + m_p * nx_p * out_bytes)
    cost = pl.CostEstimate(flops=flops, transcendentals=m_p * ns_p,
                           bytes_accessed=bytes_accessed)

    # VMEM estimate: double-buffered tiles + accumulator + live f32 intermediates.
    vmem_est = (2 * tm * nx_p * 2              # x tiles (bf16)
                + 2 * nx_p * (2 * tn) * 2      # fused fc|gate weight tiles (bf16)
                + 2 * tn * nx_p * 2            # proj weight tiles (bf16)
                + 2 * tm * nx_p * out_bytes    # out tiles
                + tm * nx_p * 4                # f32 accumulator scratch
                + 3 * tm * tn * 4              # f32 y / h / g intermediates
                + 2 * 8 * (tn + nx_p) * 4)     # bias tiles (sublane-padded)
    # Never claim the whole physical VMEM (esp. v7x); allow > 64 MiB on v5e/v6e.
    vmem_limit = int(min(0.8 * vmem_cap,
                         max(1.5 * vmem_est, 32 * 1024 * 1024)))

    kernel = functools.partial(_mlp_kernel, approx_gelu=approx_gelu)

    out = pl.pallas_call(
        kernel,
        out_shape=jax.ShapeDtypeStruct((m_p, nx_p), x.dtype),
        grid_spec=pltpu.PrefetchScalarGridSpec(
            num_scalar_prefetch=0,
            grid=(n_row_tiles, nk),
            in_specs=[
                pl.BlockSpec((tm, nx_p), lambda i, j: (i, 0)),      # x row tile (reused over j)
                pl.BlockSpec((nx_p, 2 * tn), lambda i, j: (0, j)),  # [W_fc_j | W_gate_j]
                pl.BlockSpec((1, tn), lambda i, j: (0, j)),         # b_fc tile
                pl.BlockSpec((tn, nx_p), lambda i, j: (j, 0)),      # W_proj row tile
                pl.BlockSpec((1, nx_p), lambda i, j: (0, 0)),       # b_proj (tiny, resident)
            ],
            out_specs=pl.BlockSpec((tm, nx_p), lambda i, j: (i, 0)),
            scratch_shapes=[pltpu.VMEM((tm, nx_p), jnp.float32)],   # c_proj accumulator
        ),
        compiler_params=pltpu.CompilerParams(
            dimension_semantics=("parallel", "arbitrary"),
            vmem_limit_bytes=vmem_limit),
        cost_estimate=cost,
    )(x2d, weights["w_fcg"], weights["b_fc"], weights["w_proj"], weights["b_proj"])

    return out[:M, :nx].reshape(B, T, nx)


def mlp_pallas(x, w_fc, b_fc, w_gate, w_proj, b_proj, **kwargs):
    """One-shot convenience wrapper.  For repeated calls, hoist
    prepare_mlp_weights() out of the hot path and call mlp_forward directly."""
    weights = prepare_mlp_weights(w_fc, b_fc, w_gate, w_proj, b_proj)
    return mlp_forward(x, weights, **kwargs)


def mlp_reference(x, w_fc, b_fc, w_gate, w_proj, b_proj):
    h = jnp.dot(x, w_fc) + b_fc
    h = 0.5 * h * (1.0 + jax.lax.erf(h / jnp.sqrt(2.0)))
    h = h * jnp.dot(x, w_gate)
    return jnp.dot(h, w_proj) + b_proj


if __name__ == "__main__":
    # Module-consistent small shapes: config.n_embd = 32, n_state = 4 * n_embd.
    B, T, n_embd = 2, 8, 32
    n_state = 4 * n_embd

    key = jax.random.PRNGKey(0)
    kx, kfc, kg, kproj = jax.random.split(key, 4)

    x = jax.random.normal(kx, (B, T, n_embd), dtype=jnp.float32)

    # Conv1D init: weight ~ N(0, 0.02), bias = 0.  Gated Linear weight stored
    # pre-transposed as (n_embd, n_state) so the kernel computes x @ Wg directly.
    w_fc = 0.02 * jax.random.normal(kfc, (n_embd, n_state), dtype=jnp.float32)
    b_fc = jnp.zeros((n_state,), dtype=jnp.float32)
    w_gate = 0.02 * jax.random.normal(kg, (n_embd, n_state), dtype=jnp.float32)
    w_proj = 0.02 * jax.random.normal(kproj, (n_state, n_embd), dtype=jnp.float32)
    b_proj = jnp.zeros((n_embd,), dtype=jnp.float32)

    # Weight prep done once (hoisted out of the forward path), then forward.
    prepared = prepare_mlp_weights(w_fc, b_fc, w_gate, w_proj, b_proj)
    out = mlp_forward(x, prepared)
    out = jax.block_until_ready(out)

    ref = mlp_reference(x, w_fc, b_fc, w_gate, w_proj, b_proj)
    assert out.shape == (B, T, n_embd)
    # bf16 MXU inputs with f32 accumulation -> looser tolerance than pure f32.
    assert jnp.allclose(out, ref, atol=2e-3, rtol=5e-2), (
        float(jnp.max(jnp.abs(out - ref))))

    print("KERNEL_OK")
</pallas_src>

<mosaic_0001>
module attributes {stable_mosaic.version = 11 : i64} {
  func.func @_mlp_kernel(%arg0: i32, %arg1: i32, %arg2: memref<8x128xbf16, #tpu.memory_space<vmem>>, %arg3: memref<128x256xbf16, #tpu.memory_space<vmem>>, %arg4: memref<1x128xf32, #tpu.memory_space<vmem>>, %arg5: memref<128x128xbf16, #tpu.memory_space<vmem>>, %arg6: memref<1x128xf32, #tpu.memory_space<vmem>>, %arg7: memref<8x128xf32, #tpu.memory_space<vmem>>, %arg8: memref<8x128xf32, #tpu.memory_space<vmem>>) attributes {dimension_semantics = [#tpu.dimension_semantics<parallel>, #tpu.dimension_semantics<arbitrary>], iteration_bounds = array<i64: 2, 1>, scalar_prefetch = 0 : i64, scratch_operands = 1 : i64, tpu.core_type = #tpu.core_type<tc>, window_params = [{transform_indices = @transform_0, window_bounds = array<i64: 8, 128>}, {transform_indices = @transform_1, window_bounds = array<i64: 128, 256>}, {transform_indices = @transform_2, window_bounds = array<i64: 1, 128>}, {transform_indices = @transform_3, window_bounds = array<i64: 128, 128>}, {pipeline_mode = #tpu.pipeline_mode<synchronous>, transform_indices = @transform_4, window_bounds = array<i64: 1, 128>}, {transform_indices = @transform_5, window_bounds = array<i64: 8, 128>}]} {
    %c0_i32 = arith.constant 0 : i32
    %0 = arith.cmpi eq, %arg1, %c0_i32 : i32
    %1 = arith.extui %0 : i1 to i32
    %c0_i32_0 = arith.constant 0 : i32
    %2 = arith.cmpi ne, %1, %c0_i32_0 : i32
    scf.if %2 {
      %cst_18 = arith.constant 0.000000e+00 : f32
      %29 = vector.broadcast %cst_18 : f32 to vector<8x128xf32>
      %c0_19 = arith.constant 0 : index
      %c0_20 = arith.constant 0 : index
      %30 = vector.load %arg8[%c0_19, %c0_20] : memref<8x128xf32, #tpu.memory_space<vmem>>, vector<8x128xf32>
      tpu.vector_store %arg8[%c0_19, %c0_20], %29 {strides = array<i32>} : memref<8x128xf32, #tpu.memory_space<vmem>>, vector<8x128xf32>,
    } else {
    }
    %c0 = arith.constant 0 : index
    %c0_1 = arith.constant 0 : index
    %3 = vector.load %arg2[%c0, %c0_1] : memref<8x128xbf16, #tpu.memory_space<vmem>>, vector<8x128xbf16>
    %c0_2 = arith.constant 0 : index
    %c0_3 = arith.constant 0 : index
    %4 = vector.load %arg3[%c0_2, %c0_3] : memref<128x256xbf16, #tpu.memory_space<vmem>>, vector<128x256xbf16>
    %cst = arith.constant dense<0.000000e+00> : vector<8x256xf32>
    %5 = tpu.matmul %3, %4, %cst {dimension_numbers = #tpu.dot_dimension_numbers<[1], [0], [0], [1], [0, 0, 1, 1], [], []>} : vector<8x128xbf16>, vector<128x256xbf16>, vector<8x256xf32> -> vector<8x256xf32>
    %6 = vector.extract_strided_slice %5 {offsets = [0, 0], sizes = [8, 128], strides = [1, 1]} : vector<8x256xf32> to vector<8x128xf32>
    %c0_4 = arith.constant 0 : index
    %c0_5 = arith.constant 0 : index
    %7 = vector.load %arg4[%c0_4, %c0_5] : memref<1x128xf32, #tpu.memory_space<vmem>>, vector<1x128xf32>
    %8 = vector.broadcast %7 : vector<1x128xf32> to vector<8x128xf32>
    %9 = arith.addf %6, %8 : vector<8x128xf32>
    %10 = vector.extract_strided_slice %5 {offsets = [0, 128], sizes = [8, 128], strides = [1, 1]} : vector<8x256xf32> to vector<8x128xf32>
    %cst_6 = arith.constant 5.000000e-01 : f32
    %11 = vector.broadcast %cst_6 : f32 to vector<8x128xf32>
    %12 = arith.mulf %11, %9 : vector<8x128xf32>
    %cst_7 = arith.constant 0.707106769 : f32
    %13 = vector.broadcast %cst_7 : f32 to vector<8x128xf32>
    %14 = arith.mulf %9, %13 : vector<8x128xf32>
    %15 = math.erf %14 : vector<8x128xf32>
    %cst_8 = arith.constant 1.000000e+00 : f32
    %16 = vector.broadcast %cst_8 : f32 to vector<8x128xf32>
    %17 = arith.addf %16, %15 : vector<8x128xf32>
    %18 = arith.mulf %12, %17 : vector<8x128xf32>
    %19 = arith.mulf %18, %10 : vector<8x128xf32>
    %20 = arith.truncf %19 : vector<8x128xf32> to vector<8x128xbf16>
    %c0_9 = arith.constant 0 : index
    %c0_10 = arith.constant 0 : index
    %21 = vector.load %arg8[%c0_9, %c0_10] : memref<8x128xf32, #tpu.memory_space<vmem>>, vector<8x128xf32>
    %c0_11 = arith.constant 0 : index
    %c0_12 = arith.constant 0 : index
    %22 = vector.load %arg5[%c0_11, %c0_12] : memref<128x128xbf16, #tpu.memory_space<vmem>>, vector<128x128xbf16>
    %cst_13 = arith.constant dense<0.000000e+00> : vector<8x128xf32>
    %23 = tpu.matmul %20, %22, %cst_13 {dimension_numbers = #tpu.dot_dimension_numbers<[1], [0], [0], [1], [0, 0, 1, 1], [], []>} : vector<8x128xbf16>, vector<128x128xbf16>, vector<8x128xf32> -> vector<8x128xf32>
    %24 = arith.addf %21, %23 : vector<8x128xf32>
    %c0_14 = arith.constant 0 : index
    %c0_15 = arith.constant 0 : index
    %25 = vector.load %arg8[%c0_14, %c0_15] : memref<8x128xf32, #tpu.memory_space<vmem>>, vector<8x128xf32>
    tpu.vector_store %arg8[%c0_14, %c0_15], %24 {strides = array<i32>} : memref<8x128xf32, #tpu.memory_space<vmem>>, vector<8x128xf32>,
    %c0_i32_16 = arith.constant 0 : i32
    %26 = arith.cmpi eq, %arg1, %c0_i32_16 : i32
    %27 = arith.extui %26 : i1 to i32
    %c0_i32_17 = arith.constant 0 : i32
    %28 = arith.cmpi ne, %27, %c0_i32_17 : i32
    scf.if %28 {
      %c0_18 = arith.constant 0 : index
      %c0_19 = arith.constant 0 : index
      %29 = vector.load %arg8[%c0_18, %c0_19] : memref<8x128xf32, #tpu.memory_space<vmem>>, vector<8x128xf32>
      %c0_20 = arith.constant 0 : index
      %c0_21 = arith.constant 0 : index
      %30 = vector.load %arg6[%c0_20, %c0_21] : memref<1x128xf32, #tpu.memory_space<vmem>>, vector<1x128xf32>
      %31 = vector.broadcast %30 : vector<1x128xf32> to vector<8x128xf32>
      %32 = arith.addf %29, %31 : vector<8x128xf32>
      %c0_22 = arith.constant 0 : index
      %c0_23 = arith.constant 0 : index
      %33 = vector.load %arg7[%c0_22, %c0_23] : memref<8x128xf32, #tpu.memory_space<vmem>>, vector<8x128xf32>
      tpu.vector_store %arg7[%c0_22, %c0_23], %32 {strides = array<i32>} : memref<8x128xf32, #tpu.memory_space<vmem>>, vector<8x128xf32>,
    } else {
    }
    return
  }
  func.func @transform_0(%arg0: i32, %arg1: i32) -> (i32, i32) {
    %c0_i32 = arith.constant 0 : i32
    %c0_i32_0 = arith.constant 0 : i32
    return %arg0, %c0_i32 : i32, i32
  }
  func.func @transform_1(%arg0: i32, %arg1: i32) -> (i32, i32) {
    %c0_i32 = arith.constant 0 : i32
    %c0_i32_0 = arith.constant 0 : i32
    return %c0_i32, %arg1 : i32, i32
  }
  func.func @transform_2(%arg0: i32, %arg1: i32) -> (i32, i32) {
    %c0_i32 = arith.constant 0 : i32
    %c0_i32_0 = arith.constant 0 : i32
    return %c0_i32, %arg1 : i32, i32
  }
  func.func @transform_3(%arg0: i32, %arg1: i32) -> (i32, i32) {
    %c0_i32 = arith.constant 0 : i32
    %c0_i32_0 = arith.constant 0 : i32
    return %arg1, %c0_i32 : i32, i32
  }
  func.func @transform_4(%arg0: i32, %arg1: i32) -> (i32, i32) {
    %c0_i32 = arith.constant 0 : i32
    %c0_i32_0 = arith.constant 0 : i32
    %c0_i32_1 = arith.constant 0 : i32
    return %c0_i32, %c0_i32_0 : i32, i32
  }
  func.func @transform_5(%arg0: i32, %arg1: i32) -> (i32, i32) {
    %c0_i32 = arith.constant 0 : i32
    %c0_i32_0 = arith.constant 0 : i32
    return %arg0, %c0_i32 : i32, i32
  }
}

</mosaic_0001>

<llo_original>
// kernel: tpu_custom_call.1
$region0: #{tpu_custom_call.1}
  #allocation0 [shape = 'u32[]', space=smem, size = 0x4, offset = 0x4, fixed_abs, tag = 'smem constant byte address 0x4 - core index']
  #allocation1 [shape = 'u32[144,128]{1,0:T(1,128)}', space=vmem, size = 0x12000, scoped, tag = 'internal scratch']
  #allocation2 [shape = 'f32[8,128]{1,0:T(8,128)}', space=vmem, size = 0x1000, scoped, tag = 'scratch operand']
  %s0 = inlined_call_operand.hbm [shape: bf16[16,128], index: 0, kind: input, shape index: {}]
  %s1 = inlined_call_operand.hbm [shape: bf16[128,256], index: 1, kind: input, shape index: {}]
  %s2 = inlined_call_operand.vmem [shape: f32[1,128], index: 2, kind: input, shape index: {}]
  %s3 = inlined_call_operand.hbm [shape: bf16[128,128], index: 3, kind: input, shape index: {}]
  %s4 = inlined_call_operand.vmem [shape: f32[1,128], index: 4, kind: input, shape index: {}]
  %s5 = inlined_call_operand.hbm [shape: f32[16,128], index: 5, kind: output, shape index: {}]
  %s6 = sld [smem:[#allocation0]]
  $region73: #{tpu_custom_call.1} parent=0
    _
  %s8 = ssub.s32 1, %s6
  %s9 = scalar_select 0, %s8, %s6
  $region1: #{tpu_custom_call.1} parent=0
    #allocation3 [shape = 'u8[4096]{0}', space=vmem, size = 0x1000, scoped, tag = 'input window, operand 0']
    #allocation4 [shape = 's32[2]{0}', space=sflag, size = 0x8, scoped, tag = 'scoped memory for tpu_custom_call.1']
    #allocation5 [shape = 's32[2]{0}', space=sflag, size = 0x8, scoped, tag = 'scoped memory for tpu_custom_call.1']
    #allocation6 [shape = 'u8[65536]{0}', space=vmem, size = 0x10000, scoped, tag = 'input window, operand 1, single buffered']
    #allocation7 [shape = 's32[1]{0}', space=sflag, size = 0x4, scoped, tag = 'scoped memory for tpu_custom_call.1']
    #allocation8 [shape = 'u8[32768]{0}', space=vmem, size = 0x8000, scoped, tag = 'input window, operand 3, single buffered']
    #allocation9 [shape = 'u8[8192]{0}', space=vmem, size = 0x2000, scoped, tag = 'output window, operand 0']
    %10 = vsyncpa [#allocation4], 0
    %s11 = scalar_lea.sflag [#allocation4], 1
    %12 = vsyncpa %s11, 0
    %13 = vsyncpa [#allocation7], 0
    %14 = vsyncpa [#allocation5], 0
    %s15 = scalar_lea.sflag [#allocation5], 1
    %16 = vsyncpa %s15, 0
    loop: start=0, step=1, limit=4
    $region2: #{tpu_custom_call.1} parent=1 // loop_pre_header
      _
    $region3: #{tpu_custom_call.1} parent=1 // loop_header
      %s18 = sphi 0, %s22
      %p19 = scmp.ge.s32.totalorder %s18, 4
      %s25 = sphi 0, %s37
      %s26 = sphi 0, %s33
      %s27 = sphi 0, %s25
      %s28 = sphi 0, %s26
      %s29 = sphi 0, %s27
      %s30 = sphi 0, %s28
      %s40 = sphi 0, %s42
      %s43 = sphi 0, %s40
      %s44 = sphi 0, %s43
      %s60 = sphi 0, %s44
      %s66 = sphi 0, %s68
      %s69 = sphi 0, %s66
      %s70 = sphi 0, %s69
      %s86 = sphi 0, %s70
      %s92 = sphi 0, %s94
      %s95 = sphi 0, %s92
      %s96 = sphi 0, %s95
      %s112 = sphi 0, %s96
      %s118 = sphi 0, %s120
      %s121 = sphi 0, %s118
      %s122 = sphi 0, %s121
      %s138 = sphi 0, %s122
      %s142 = sphi 0, %s142
      %s144 = sphi 0, %s142
      %s145 = sphi 0, %s144
      %s159 = sphi 0, %s145
      %s165 = sphi 0, %s167
      %s168 = sphi 0, %s165
      %s169 = sphi 0, %s168
      %s185 = sphi 0, %s169
    $region4: #{tpu_custom_call.1} parent=1 // loop_header_branch
      %21 = sbr.rel (%p19) target = $region8
    $region5: #{tpu_custom_call.1} parent=1 // loop_body
      %s23 = ssub.s32 %s18, 1
      %s24 = ssub.s32 %s18, 2
      %s31 = sadd.s32 1, %s26
      %p32 = scmp.ge.s32.totalorder %s31, 1
      %s33 = scalar_select %p32, 0, %s31
      %s34 = sadd.s32 1, %s25
      %s35 = scalar_select %p32, %s34, %s25
      %p36 = scmp.ge.s32.totalorder %s35, 2
      %s37 = scalar_select %p36, 0, %s35
      %s38 = ssub.s32 %s25, %s37
      %p39 = scmp.eq.s32.totalorder %s38, 0
      %s41 = sadd.s32 %s40, 1
      %s42 = scalar_select %p39, %s40, %s41
      %p45 = pneg %p39
      %p46 = scmp.eq.s32.totalorder %s18, 1
      %p47 = por %p45, %p46
      %p48 = scmp.ne.s32.totalorder %s40, %s43
      %p49 = scmp.eq.s32.totalorder %s18, 0
      %p50 = por %p48, %p49
      %p51 = scmp.ne.s32.totalorder %s40, %s43
      %p52 = scmp.eq.s32.totalorder %s23, 1
      %p53 = por %p51, %p52
      %p54 = scmp.ne.s32.totalorder %s43, %s44
      %p55 = scmp.eq.s32.totalorder %s23, 0
      %p56 = por %p54, %p55
      %p57 = scmp.ne.s32.totalorder %s43, %s44
      %p58 = scmp.eq.s32.totalorder %s24, 1
      %p59 = por %p57, %p58
      %p61 = scmp.ne.s32.totalorder %s44, %s60
      %p62 = scmp.eq.s32.totalorder %s24, 0
      %p63 = por %p61, %p62
      %s64 = ssub.s32 %s26, %s33
      %p65 = scmp.eq.s32.totalorder %s64, 0
      %s67 = sadd.s32 %s66, 1
      %s68 = scalar_select %p65, %s66, %s67
      %p71 = pneg %p65
      %p72 = scmp.eq.s32.totalorder %s18, 1
      %p73 = por %p71, %p72
      %p74 = scmp.ne.s32.totalorder %s66, %s69
      %p75 = scmp.eq.s32.totalorder %s18, 0
      %p76 = por %p74, %p75
      %p77 = scmp.ne.s32.totalorder %s66, %s69
      %p78 = scmp.eq.s32.totalorder %s23, 1
      %p79 = por %p77, %p78
      %p80 = scmp.ne.s32.totalorder %s69, %s70
      %p81 = scmp.eq.s32.totalorder %s23, 0
      %p82 = por %p80, %p81
      %p83 = scmp.ne.s32.totalorder %s69, %s70
      %p84 = scmp.eq.s32.totalorder %s24, 1
      %p85 = por %p83, %p84
      %p87 = scmp.ne.s32.totalorder %s70, %s86
      %p88 = scmp.eq.s32.totalorder %s24, 0
      %p89 = por %p87, %p88
      %s90 = ssub.s32 %s26, %s33
      %p91 = scmp.eq.s32.totalorder %s90, 0
      %s93 = sadd.s32 %s92, 1
      %s94 = scalar_select %p91, %s92, %s93
      %p97 = pneg %p91
      %p98 = scmp.eq.s32.totalorder %s18, 1
      %p99 = por %p97, %p98
      %p100 = scmp.ne.s32.totalorder %s92, %s95
      %p101 = scmp.eq.s32.totalorder %s18, 0
      %p102 = por %p100, %p101
      %p103 = scmp.ne.s32.totalorder %s92, %s95
      %p104 = scmp.eq.s32.totalorder %s23, 1
      %p105 = por %p103, %p104
      %p106 = scmp.ne.s32.totalorder %s95, %s96
      %p107 = scmp.eq.s32.totalorder %s23, 0
      %p108 = por %p106, %p107
      %p109 = scmp.ne.s32.totalorder %s95, %s96
      %p110 = scmp.eq.s32.totalorder %s24, 1
      %p111 = por %p109, %p110
      %p113 = scmp.ne.s32.totalorder %s96, %s112
      %p114 = scmp.eq.s32.totalorder %s24, 0
      %p115 = por %p113, %p114
      %s116 = ssub.s32 %s26, %s33
      %p117 = scmp.eq.s32.totalorder %s116, 0
      %s119 = sadd.s32 %s118, 1
      %s120 = scalar_select %p117, %s118, %s119
      %p123 = pneg %p117
      %p124 = scmp.eq.s32.totalorder %s18, 1
      %p125 = por %p123, %p124
      %p126 = scmp.ne.s32.totalorder %s118, %s121
      %p127 = scmp.eq.s32.totalorder %s18, 0
      %p128 = por %p126, %p127
      %p129 = scmp.ne.s32.totalorder %s118, %s121
      %p130 = scmp.eq.s32.totalorder %s23, 1
      %p131 = por %p129, %p130
      %p132 = scmp.ne.s32.totalorder %s121, %s122
      %p133 = scmp.eq.s32.totalorder %s23, 0
      %p134 = por %p132, %p133
      %p135 = scmp.ne.s32.totalorder %s121, %s122
      %p136 = scmp.eq.s32.totalorder %s24, 1
      %p137 = por %p135, %p136
      %p139 = scmp.ne.s32.totalorder %s122, %s138
      %p140 = scmp.eq.s32.totalorder %s24, 0
      %p141 = por %p139, %p140
      %s143 = sadd.s32 %s142, 1
      %p146 = scmp.eq.s32.totalorder %s18, 1
      %p147 = scmp.ne.s32.totalorder %s142, %s144
      %p148 = scmp.eq.s32.totalorder %s18, 0
      %p149 = por %p147, %p148
      %p150 = scmp.ne.s32.totalorder %s142, %s144
      %p151 = scmp.eq.s32.totalorder %s23, 1
      %p152 = por %p150, %p151
      %p153 = scmp.ne.s32.totalorder %s144, %s145
      %p154 = scmp.eq.s32.totalorder %s23, 0
      %p155 = por %p153, %p154
      %p156 = scmp.ne.s32.totalorder %s144, %s145
      %p157 = scmp.eq.s32.totalorder %s24, 1
      %p158 = por %p156, %p157
      %p160 = scmp.ne.s32.totalorder %s145, %s159
      %p161 = scmp.eq.s32.totalorder %s24, 0
      %p162 = por %p160, %p161
      %s163 = ssub.s32 %s25, %s37
      %p164 = scmp.eq.s32.totalorder %s163, 0
      %s166 = sadd.s32 %s165, 1
      %s167 = scalar_select %p164, %s165, %s166
      %p170 = pneg %p164
      %p171 = scmp.eq.s32.totalorder %s18, 1
      %p172 = por %p170, %p171
      %p173 = scmp.ne.s32.totalorder %s165, %s168
      %p174 = scmp.eq.s32.totalorder %s18, 0
      %p175 = por %p173, %p174
      %p176 = scmp.ne.s32.totalorder %s165, %s168
      %p177 = scmp.eq.s32.totalorder %s23, 1
      %p178 = por %p176, %p177
      %p179 = scmp.ne.s32.totalorder %s168, %s169
      %p180 = scmp.eq.s32.totalorder %s23, 0
      %p181 = por %p179, %p180
      %p182 = scmp.ne.s32.totalorder %s168, %s169
      %p183 = scmp.eq.s32.totalorder %s24, 1
      %p184 = por %p182, %p183
      %p186 = scmp.ne.s32.totalorder %s169, %s185
      %p187 = scmp.eq.s32.totalorder %s24, 0
      %p188 = por %p186, %p187
      %p189 = scmp.le.s32.totalorder 1, %s18
      %p190 = scmp.lt.s32.totalorder %s18, 3
      %p191 = pnand %p189, %p190
      %p192 = pneg %p191
      // Predicated region
      $region9: #{tpu_custom_call.1} parent=5 // pred_check
        _
      $region10: #{tpu_custom_call.1} parent=5 // pred_check_branch
        %194 = sbr.rel (%p191) target = $region12
      $region11: #{tpu_custom_call.1} parent=5 // pred_region
        %s195 = ssub.s32 %s18, 1
        // Predicated region
        $region13: #{tpu_custom_call.1} parent=11 // pred_check
          %p196 = pneg %p82
        $region14: #{tpu_custom_call.1} parent=11 // pred_check_branch
          %198 = sbr.rel (%p196) target = $region16
        $region15: #{tpu_custom_call.1} parent=11 // pred_region
          %s199 = smul.u32 2, %s28
          %s201 = ssub.s32 2048, 2048
          %202 = vsyncadd [#allocation7], %s201
          %s203 = smul.addr %s199, 64
          %s204 = scalar_lea.hbm %s1, %s203
          %s205 = sshll.u32 [#allocation6], 4
          %s206 = int_to_ptr.vmem [resolvable:$true] %s205
          %211 = dma.hbm_to_vmem [thread:$0]  %s204, 2048, %s206, [#allocation7], 128, 128, 8
        $region16: #{tpu_custom_call.1} parent=11 // pred_fallthru
          _
        // Predicated region
        $region17: #{tpu_custom_call.1} parent=11 // pred_check
          %p212 = pneg %p108
        $region18: #{tpu_custom_call.1} parent=11 // pred_check_branch
          %214 = sbr.rel (%p212) target = $region20
        $region19: #{tpu_custom_call.1} parent=11 // pred_region
          %p215 = scmp.lt.s32.totalorder %s28, 0
          %s216 = scalar_select %p215, %s28, 0
          %s217 = scalar_lea.vmem %s2, %s216
        $region20: #{tpu_custom_call.1} parent=11 // pred_fallthru
          _
        // Predicated region
        $region21: #{tpu_custom_call.1} parent=11 // pred_check
          %p218 = pneg %p134
        $region22: #{tpu_custom_call.1} parent=11 // pred_check_branch
          %220 = sbr.rel (%p218) target = $region24
        $region23: #{tpu_custom_call.1} parent=11 // pred_region
          %s221 = smul.u32 16, %s28
          %s223 = ssub.s32 1024, 1024
          %224 = vsyncadd [#allocation7], %s223
          %s225 = smul.addr %s221, 64
          %s226 = scalar_lea.hbm %s3, %s225
          %s227 = sshll.u32 [#allocation8], 4
          %s228 = int_to_ptr.vmem [resolvable:$true] %s227
          %233 = dma.hbm_to_vmem [thread:$0]  %s226, 1024, %s228, [#allocation7], 64, 64, 4
        $region24: #{tpu_custom_call.1} parent=11 // pred_fallthru
          _
        // Predicated region
        $region25: #{tpu_custom_call.1} parent=11 // pred_check
          %p234 = pneg %p155
        $region26: #{tpu_custom_call.1} parent=11 // pred_check_branch
          %236 = sbr.rel (%p234) target = $region28
        $region27: #{tpu_custom_call.1} parent=11 // pred_region
          _
        $region28: #{tpu_custom_call.1} parent=11 // pred_fallthru
          _
      $region12: #{tpu_custom_call.1} parent=5 // pred_fallthru
        _
      %p237 = scmp.lt.s32.totalorder %s18, 2
      // Predicated region
      $region29: #{tpu_custom_call.1} parent=5 // pred_check
        %p238 = pneg %p237
      $region30: #{tpu_custom_call.1} parent=5 // pred_check_branch
        %240 = sbr.rel (%p238) target = $region32
      $region31: #{tpu_custom_call.1} parent=5 // pred_region
        // Predicated region
        $region33: #{tpu_custom_call.1} parent=31 // pred_check
          %p241 = pneg %p50
        $region34: #{tpu_custom_call.1} parent=31 // pred_check_branch
          %243 = sbr.rel (%p241) target = $region36
        $region35: #{tpu_custom_call.1} parent=31 // pred_region
          %s244 = sand.u32 %s40, 1
          %s245 = scalar_lea.sflag [#allocation4], %s244
          %s246 = sand.u32 %s40, 1
          %s247 = smul.addr %s246, 4
          %s248 = scalar_lea.vmem [#allocation3], %s247
          %s250 = ssub.s32 64, 64
          %251 = vsyncadd %s245, %s250
          %s252 = smul.addr %s25, 64
          %s253 = scalar_lea.hbm %s0, %s252
          %s255 = sshll.u32 %s248, 4
          %s256 = int_to_ptr.vmem [resolvable:$true] %s255
          %258 = dma.hbm_to_vmem [thread:$0]  %s253, 64, %s256, %s245
        $region36: #{tpu_custom_call.1} parent=31 // pred_fallthru
          _
      $region32: #{tpu_custom_call.1} parent=5 // pred_fallthru
        _
      %p259 = scmp.le.s32.totalorder 1, %s18
      %p260 = scmp.lt.s32.totalorder %s18, 3
      %p261 = pnand %p259, %p260
      %p262 = pneg %p261
      // Predicated region
      $region37: #{tpu_custom_call.1} parent=5 // pred_check
        _
      $region38: #{tpu_custom_call.1} parent=5 // pred_check_branch
        %264 = sbr.rel (%p261) target = $region40
      $region39: #{tpu_custom_call.1} parent=5 // pred_region
        %s265 = ssub.s32 %s18, 1
        %s266 = sand.u32 %s43, 1
        %s267 = scalar_lea.sflag [#allocation4], %s266
        %s268 = sand.u32 %s43, 1
        %s269 = smul.addr %s268, 4
        %s270 = scalar_lea.vmem [#allocation3], %s269
        // Predicated region
        $region41: #{tpu_custom_call.1} parent=39 // pred_check
          %p271 = pneg %p56
        $region42: #{tpu_custom_call.1} parent=39 // pred_check_branch
          %273 = sbr.rel (%p271) target = $region44
        $region43: #{tpu_custom_call.1} parent=39 // pred_region
          %274 = dma.done %s267, 64
        $region44: #{tpu_custom_call.1} parent=39 // pred_fallthru
          _
        // Predicated region
        $region45: #{tpu_custom_call.1} parent=39 // pred_check
          %p275 = pneg %p82
        $region46: #{tpu_custom_call.1} parent=39 // pred_check_branch
          %277 = sbr.rel (%p275) target = $region48
        $region47: #{tpu_custom_call.1} parent=39 // pred_region
          %278 = dma.done [#allocation7], 2048
        $region48: #{tpu_custom_call.1} parent=39 // pred_fallthru
          _
        // Predicated region
        $region49: #{tpu_custom_call.1} parent=39 // pred_check
          %p279 = pneg %p134
        $region50: #{tpu_custom_call.1} parent=39 // pred_check_branch
          %281 = sbr.rel (%p279) target = $region52
        $region51: #{tpu_custom_call.1} parent=39 // pred_region
          %282 = dma.done [#allocation7], 1024
        $region52: #{tpu_custom_call.1} parent=39 // pred_fallthru
          _
        %s283 = sand.u32 %s43, 1
        %s284 = scalar_lea.sflag [#allocation4], %s283
        %s285 = sand.u32 %s43, 1
        %s286 = smul.addr %s285, 4
        %s287 = scalar_lea.vmem [#allocation3], %s286
        %p288 = pneg %p56
        %p289 = pneg %p53
        %p290 = pneg %p82
        %p291 = pneg %p79
        %p292 = scmp.lt.s32.totalorder %s28, 0
        %s293 = scalar_select %p292, %s28, 0
        %s294 = scalar_lea.vmem %s2, %s293
        %p295 = pneg %p108
        %p296 = pneg %p105
        %p297 = pneg %p134
        %p298 = pneg %p131
        %p299 = pneg %p155
        %p300 = pneg %p152
        %p301 = pneg %p181
        %p302 = pneg %p178
        %s303 = sand.u32 %s168, 1
        %s304 = scalar_lea.sflag [#allocation5], %s303
        %s305 = sand.u32 %s168, 1
        %s306 = smul.addr %s305, 8
        %s307 = scalar_lea.vmem [#allocation9], %s306
        %s308 = smul.u32 2, %s28
        %p309 = scmp.lt.s32.totalorder %s28, 0
        %s310 = scalar_select %p309, %s28, 0
        %s311 = scalar_lea.vmem %s2, %s310
        %s312 = smul.u32 16, %s28
        %p314 = scmp.eq.s32.totalorder %s28, 0
        // Predicated region
        $region53: #{tpu_custom_call.1} parent=39 // pred_check
          %p315 = pneg %p314
        $region54: #{tpu_custom_call.1} parent=39 // pred_check_branch
          %317 = sbr.rel (%p315) target = $region56
        $region55: #{tpu_custom_call.1} parent=39 // pred_region
          %318 = vst [vmem:[#allocation2] sm:$0xff] 0.0
        $region56: #{tpu_custom_call.1} parent=39 // pred_fallthru
          _
        %v319 = vld [vmem:[%s270] sm:$0xf]
        %v320 = vld [vmem:[#allocation6] sm:$0xff]
        %v321 = vld [vmem:[#allocation6 + $0x8] sm:$0xff]
        %v322 = vld [vmem:[#allocation6 + $0x10] sm:$0xff]
        %v323 = vld [vmem:[#allocation6 + $0x18] sm:$0xff]
        %v324 = vld [vmem:[#allocation6 + $0x20] sm:$0xff]
        %v325 = vld [vmem:[#allocation6 + $0x28] sm:$0xff]
        %v326 = vld [vmem:[#allocation6 + $0x30] sm:$0xff]
        %v327 = vld [vmem:[#allocation6 + $0x38] sm:$0xff]
        %v328 = vld [vmem:[#allocation6 + $0x40] sm:$0xff]
        %v329 = vld [vmem:[#allocation6 + $0x48] sm:$0xff]
        %v330 = vld [vmem:[#allocation6 + $0x50] sm:$0xff]
        %v331 = vld [vmem:[#allocation6 + $0x58] sm:$0xff]
        %v332 = vld [vmem:[#allocation6 + $0x60] sm:$0xff]
        %v333 = vld [vmem:[#allocation6 + $0x68] sm:$0xff]
        %v334 = vld [vmem:[#allocation6 + $0x70] sm:$0xff]
        %v335 = vld [vmem:[#allocation6 + $0x78] sm:$0xff]
        %v352 = vunpack.c.l.b16 %v320
        %v353 = vunpack.c.h.b16 %v320
        %v354 = vunpack.c.l.b16 %v321
        %v355 = vunpack.c.h.b16 %v321
        %v356 = vunpack.c.l.b16 %v322
        %v357 = vunpack.c.h.b16 %v322
        %v358 = vunpack.c.l.b16 %v323
        %v359 = vunpack.c.h.b16 %v323
        %v360 = vunpack.c.l.b16 %v324
        %v361 = vunpack.c.h.b16 %v324
        %v362 = vunpack.c.l.b16 %v325
        %v363 = vunpack.c.h.b16 %v325
        %v364 = vunpack.c.l.b16 %v326
        %v365 = vunpack.c.h.b16 %v326
        %v366 = vunpack.c.l.b16 %v327
        %v367 = vunpack.c.h.b16 %v327
        %v368 = vunpack.c.l.b16 %v328
        %v369 = vunpack.c.h.b16 %v328
        %v370 = vunpack.c.l.b16 %v329
        %v371 = vunpack.c.h.b16 %v329
        %v372 = vunpack.c.l.b16 %v330
        %v373 = vunpack.c.h.b16 %v330
        %v374 = vunpack.c.l.b16 %v331
        %v375 = vunpack.c.h.b16 %v331
        %v376 = vunpack.c.l.b16 %v332
        %v377 = vunpack.c.h.b16 %v332
        %v378 = vunpack.c.l.b16 %v333
        %v379 = vunpack.c.h.b16 %v333
        %v380 = vunpack.c.l.b16 %v334
        %v381 = vunpack.c.h.b16 %v334
        %v382 = vunpack.c.l.b16 %v335
        %v383 = vunpack.c.h.b16 %v335
        %v384 = vpack.c.b16 %v354, %v352
        %v385 = vpack.c.b16 %v355, %v353
        %v386 = vpack.c.b16 %v358, %v356
        %v387 = vpack.c.b16 %v359, %v357
        %v388 = vpack.c.b16 %v362, %v360
        %v389 = vpack.c.b16 %v363, %v361
        %v390 = vpack.c.b16 %v366, %v364
        %v391 = vpack.c.b16 %v367, %v365
        %v392 = vpack.c.b16 %v370, %v368
        %v393 = vpack.c.b16 %v371, %v369
        %v394 = vpack.c.b16 %v374, %v372
        %v395 = vpack.c.b16 %v375, %v373
        %v396 = vpack.c.b16 %v378, %v376
        %v397 = vpack.c.b16 %v379, %v377
        %v398 = vpack.c.b16 %v382, %v380
        %v399 = vpack.c.b16 %v383, %v381
        %416 = vmatprep.subr.bf16.mxu0 %v385
        %417 = vmatpush1.bf16.msra.mxu0 %v384
        %418 = vmatprep.subr.bf16.mxu0 %v387
        %419 = vmatpush1.bf16.msra.mxu0 %v386
        %420 = vmatprep.subr.bf16.mxu0 %v389
        %421 = vmatpush1.bf16.msra.mxu0 %v388
        %422 = vmatprep.subr.bf16.mxu0 %v391
        %423 = vmatpush1.bf16.msra.mxu0 %v390
        %424 = vmatprep.subr.bf16.mxu0 %v393
        %425 = vmatpush1.bf16.msra.mxu0 %v392
        %426 = vmatprep.subr.bf16.mxu0 %v395
        %427 = vmatpush1.bf16.msra.mxu0 %v394
        %428 = vmatprep.subr.bf16.mxu0 %v397
        %429 = vmatpush1.bf16.msra.mxu0 %v396
        %430 = vmatprep.subr.bf16.mxu0 %v399
        %431 = vmatpush1.bf16.msra.mxu0 %v398
        %432 = vmatprep.subr.bf16.mxu0 0
        %433 = vmatpush1.bf16.msra.mxu0 0
        %434 = vmatprep.subr.bf16.mxu0 0
        %435 = vmatpush1.bf16.msra.mxu0 0
        %436 = vmatprep.subr.bf16.mxu0 0
        %437 = vmatpush1.bf16.msra.mxu0 0
        %438 = vmatprep.subr.bf16.mxu0 0
        %439 = vmatpush1.bf16.msra.mxu0 0
        %440 = vmatprep.subr.bf16.mxu0 0
        %441 = vmatpush1.bf16.msra.mxu0 0
        %442 = vmatprep.subr.bf16.mxu0 0
        %443 = vmatpush1.bf16.msra.mxu0 0
        %444 = vmatprep.subr.bf16.mxu0 0
        %445 = vmatpush1.bf16.msra.mxu0 0
        %446 = vmatprep.subr.bf16.mxu0 0
        %447 = vmatpush1.bf16.msra.mxu0 0
        %448 = vmatprep.mubr.bf16.mxu0 0
        %449 = vmatmul.mubr.bf16.gmra.mrb[0].mxu0 %v319
        %v450 = vpop.f32.mrb[0].mxu0
        %v451 = vadd.f32 0.0, %v450
        %v452 = vpop.f32.mrb[0].mxu0
        %v453 = vadd.f32 0.0, %v452
        %v454 = vpop.f32.mrb[0].mxu0
        %v455 = vpop.f32.mrb[0].mxu0
        %456 = vdwg.mxu0
        %v457 = vld [vmem:[%s311] sm:$0x1]
        %v459 = vlaneseq
        %v460 = vshrl.u32 %v459, 7
        %v461 = vsub.s32 0, %v460
        %v462 = vrot.slane %v457, %v461
        %v464 = vadd.f32 %v451, %v462
        %v465 = vmul.f32 %v464, 0.5
        %v466 = vmul.f32 %v464, 0.70710677
        %v467 = verf.f32.pop %v466
        %v468 = vadd.f32 %v467, 1.0
        %v469 = vmul.f32 %v465, %v468
        %v470 = vmul.f32 %v469, %v453
        %v471 = vpack.c.bf16 %v470, %v470
        %v472 = vld [vmem:[#allocation2] sm:$0xff]
        %v473 = vld [vmem:[#allocation8] sm:$0xf]
        %v474 = vld [vmem:[#allocation8 + $0x4] sm:$0xf]
        %v475 = vld [vmem:[#allocation8 + $0x8] sm:$0xf]
        %v476 = vld [vmem:[#allocation8 + $0xc] sm:$0xf]
        %v477 = vld [vmem:[#allocation8 + $0x10] sm:$0xf]
        %v478 = vld [vmem:[#allocation8 + $0x14] sm:$0xf]
        %v479 = vld [vmem:[#allocation8 + $0x18] sm:$0xf]
        %v480 = vld [vmem:[#allocation8 + $0x1c] sm:$0xf]
        %v481 = vld [vmem:[#allocation8 + $0x20] sm:$0xf]
        %v482 = vld [vmem:[#allocation8 + $0x24] sm:$0xf]
        %v483 = vld [vmem:[#allocation8 + $0x28] sm:$0xf]
        %v484 = vld [vmem:[#allocation8 + $0x2c] sm:$0xf]
        %v485 = vld [vmem:[#allocation8 + $0x30] sm:$0xf]
        %v486 = vld [vmem:[#allocation8 + $0x34] sm:$0xf]
        %v487 = vld [vmem:[#allocation8 + $0x38] sm:$0xf]
        %v488 = vld [vmem:[#allocation8 + $0x3c] sm:$0xf]
        %v505 = vunpack.c.l.b16 %v473
        %v506 = vunpack.c.l.b16 %v474
        %v507 = vunpack.c.l.b16 %v475
        %v508 = vunpack.c.l.b16 %v476
        %v509 = vunpack.c.l.b16 %v477
        %v510 = vunpack.c.l.b16 %v478
        %v511 = vunpack.c.l.b16 %v479
        %v512 = vunpack.c.l.b16 %v480
        %v513 = vunpack.c.l.b16 %v481
        %v514 = vunpack.c.l.b16 %v482
        %v515 = vunpack.c.l.b16 %v483
        %v516 = vunpack.c.l.b16 %v484
        %v517 = vunpack.c.l.b16 %v485
        %v518 = vunpack.c.l.b16 %v486
        %v519 = vunpack.c.l.b16 %v487
        %v520 = vunpack.c.l.b16 %v488
        %v521 = vpack.c.b16 %v506, %v505
        %v522 = vpack.c.b16 %v508, %v507
        %v523 = vpack.c.b16 %v510, %v509
        %v524 = vpack.c.b16 %v512, %v511
        %v525 = vpack.c.b16 %v514, %v513
        %v526 = vpack.c.b16 %v516, %v515
        %v527 = vpack.c.b16 %v518, %v517
        %v528 = vpack.c.b16 %v520, %v519
        %537 = vmatprep.subr.bf16.mxu0 0
        %538 = vmatpush1.bf16.msra.mxu0 %v521
        %539 = vmatprep.subr.bf16.mxu0 0
        %540 = vmatpush1.bf16.msra.mxu0 %v522
        %541 = vmatprep.subr.bf16.mxu0 0
        %542 = vmatpush1.bf16.msra.mxu0 %v523
        %543 = vmatprep.subr.bf16.mxu0 0
        %544 = vmatpush1.bf16.msra.mxu0 %v524
        %545 = vmatprep.subr.bf16.mxu0 0
        %546 = vmatpush1.bf16.msra.mxu0 %v525
        %547 = vmatprep.subr.bf16.mxu0 0
        %548 = vmatpush1.bf16.msra.mxu0 %v526
        %549 = vmatprep.subr.bf16.mxu0 0
        %550 = vmatpush1.bf16.msra.mxu0 %v527
        %551 = vmatprep.subr.bf16.mxu0 0
        %552 = vmatpush1.bf16.msra.mxu0 %v528
        %553 = vmatprep.subr.bf16.mxu0 0
        %554 = vmatpush1.bf16.msra.mxu0 0
        %555 = vmatprep.subr.bf16.mxu0 0
        %556 = vmatpush1.bf16.msra.mxu0 0
        %557 = vmatprep.subr.bf16.mxu0 0
        %558 = vmatpush1.bf16.msra.mxu0 0
        %559 = vmatprep.subr.bf16.mxu0 0
        %560 = vmatpush1.bf16.msra.mxu0 0
        %561 = vmatprep.subr.bf16.mxu0 0
        %562 = vmatpush1.bf16.msra.mxu0 0
        %563 = vmatprep.subr.bf16.mxu0 0
        %564 = vmatpush1.bf16.msra.mxu0 0
        %565 = vmatprep.subr.bf16.mxu0 0
        %566 = vmatpush1.bf16.msra.mxu0 0
        %567 = vmatprep.subr.bf16.mxu0 0
        %568 = vmatpush1.bf16.msra.mxu0 0
        %569 = vmatprep.mubr.bf16.mxu0 0
        %570 = vmatmul.mubr.bf16.gmra.mrb[0].mxu0 %v471
        %v571 = vpop.f32.mrb[0].mxu0
        %v572 = vadd.f32 0.0, %v571
        %v573 = vpop.f32.mrb[0].mxu0
        %v574 = vpop.f32.mrb[0].mxu0
        %v575 = vpop.f32.mrb[0].mxu0
        %576 = vdwg.mxu0
        %v577 = vadd.f32 %v472, %v572
        %578 = vst [vmem:[#allocation2] sm:$0xff] %v577
        // Predicated region
        $region57: #{tpu_custom_call.1} parent=39 // pred_check
          %p579 = pneg %p314
        $region58: #{tpu_custom_call.1} parent=39 // pred_check_branch
          %581 = sbr.rel (%p579) target = $region60
        $region59: #{tpu_custom_call.1} parent=39 // pred_region
          %v582 = vld [vmem:[#allocation2] sm:$0xff]
          %v583 = vld [vmem:[%s4] sm:$0x1]
          %v585 = vlaneseq
          %v586 = vshrl.u32 %v585, 7
          %v587 = vsub.s32 0, %v586
          %v588 = vrot.slane %v583, %v587
          %v590 = vadd.f32 %v582, %v588
          %591 = vst [vmem:[%s307] sm:$0xff] %v590
        $region60: #{tpu_custom_call.1} parent=39 // pred_fallthru
          _
        %s592 = sand.u32 %s168, 1
        %s593 = scalar_lea.sflag [#allocation5], %s592
        %s594 = sand.u32 %s168, 1
        %s595 = smul.addr %s594, 8
        %s596 = scalar_lea.vmem [#allocation9], %s595
        // Predicated region
        $region61: #{tpu_custom_call.1} parent=39 // pred_check
          %p597 = pneg %p178
        $region62: #{tpu_custom_call.1} parent=39 // pred_check_branch
          %599 = sbr.rel (%p597) target = $region64
        $region63: #{tpu_custom_call.1} parent=39 // pred_region
          %s601 = ssub.s32 128, 128
          %602 = vsyncadd %s593, %s601
          %s603 = smul.addr %s27, 128
          %s604 = scalar_lea.hbm %s5, %s603
          %s606 = sshll.u32 %s596, 4
          %s607 = int_to_ptr.vmem [resolvable:$true] %s606
          %609 = dma.vmem_to_hbm [thread:$0]  %s607, 128, %s604, %s593
        $region64: #{tpu_custom_call.1} parent=39 // pred_fallthru
          _
      $region40: #{tpu_custom_call.1} parent=5 // pred_fallthru
        _
      %p610 = scmp.le.s32.totalorder 2, %s18
      // Predicated region
      $region65: #{tpu_custom_call.1} parent=5 // pred_check
        %p611 = pneg %p610
      $region66: #{tpu_custom_call.1} parent=5 // pred_check_branch
        %613 = sbr.rel (%p611) target = $region68
      $region67: #{tpu_custom_call.1} parent=5 // pred_region
        %s614 = ssub.s32 %s18, 2
        // Predicated region
        $region69: #{tpu_custom_call.1} parent=67 // pred_check
          %p615 = pneg %p184
        $region70: #{tpu_custom_call.1} parent=67 // pred_check_branch
          %617 = sbr.rel (%p615) target = $region72
        $region71: #{tpu_custom_call.1} parent=67 // pred_region
          %s618 = sand.u32 %s169, 1
          %s619 = scalar_lea.sflag [#allocation5], %s618
          %s620 = sand.u32 %s169, 1
          %s621 = smul.addr %s620, 8
          %s622 = scalar_lea.vmem [#allocation9], %s621
          %623 = dma.done %s619, 128
        $region72: #{tpu_custom_call.1} parent=67 // pred_fallthru
          _
      $region68: #{tpu_custom_call.1} parent=5 // pred_fallthru
        _
    $region6: #{tpu_custom_call.1} parent=1 // loop_footer
      %s22 = sadd.s32 1, %s18
    $region7: #{tpu_custom_call.1} parent=1 // loop_footer_branch
      %17 = sbr.rel target = $region3
    $region8: #{tpu_custom_call.1} parent=1 // loop_exit
      _
    %624 = vsyncpa [#allocation4], 1
    %s625 = scalar_lea.sflag [#allocation4], 1
    %626 = vsyncpa %s625, 1
    %627 = vsyncpa [#allocation7], 1
    %628 = vsyncpa [#allocation5], 1
    %s629 = scalar_lea.sflag [#allocation5], 1
    %630 = vsyncpa %s629, 1

</llo_original>
